<compile_context>
chip_gen: v6e
topology: v6e:2x2x1
jax: 0.10.0
libtpu: 0.0.40
codegen_flags: <defaults>
</compile_context>

<pallas_src>
import functools

import jax
import jax.numpy as jnp
from jax.experimental import pallas as pl
from jax.experimental.pallas import tpu as pltpu


def _round_up(x, m):
    return (x + m - 1) // m * m


def _vmem_policy():
    """Generation-aware (budget_bytes, scoped_limit_cap_bytes)."""
    try:
        cap = int(pltpu.get_tpu_info().vmem_capacity_bytes)
    except Exception:
        cap = 64 << 20                       # conservative: assume v7x-sized VMEM
    if cap <= (64 << 20):                    # v7x: 64 MiB physical VMEM
        return 40 << 20, 48 << 20            # leave >=16 MiB for Mosaic scratch
    return 96 << 20, 100 << 20               # v5e / v6e: 128 MiB physical VMEM


# ----------------------------------------------------------------------------
# Kernels
# ----------------------------------------------------------------------------
def _ideal_filter_btile_kernel(w_ref, sig_ref, v_ref, vt_ref, o_ref):
    # w: (1,) f32 in SMEM; sig: (tm, Np); v: (Np, Kp); vt: (Kp, Np); o: (tm, Np)
    proj = jnp.dot(sig_ref[...], v_ref[...],
                   preferred_element_type=jnp.float32)            # MXU, f32 acc
    proj = (proj * w_ref[0]).astype(vt_ref.dtype)                 # scale tiny proj
    o_ref[...] = jnp.dot(proj, vt_ref[...],
                         preferred_element_type=jnp.float32).astype(o_ref.dtype)


def _ideal_filter_ntile_kernel(w_ref, sig_ref, v_ref, vt_ref, o_ref, proj_ref):
    # Small-batch path: sig (tm, Np) and v (Np, Kp) are resident; vt streams in
    # (Kp, tn) column tiles; proj is built once at step 0 and reused.
    @pl.when(pl.program_id(0) == 0)
    def _():
        proj = jnp.dot(sig_ref[...], v_ref[...],
                       preferred_element_type=jnp.float32)
        proj_ref[...] = proj * w_ref[0]

    o_ref[...] = jnp.dot(proj_ref[...].astype(vt_ref.dtype), vt_ref[...],
                         preferred_element_type=jnp.float32).astype(o_ref.dtype)


# ----------------------------------------------------------------------------
# One-time (fit-time) basis preparation — cache the result across forward calls
# ----------------------------------------------------------------------------
def prepare_ideal_basis(ideal_pass, compute_dtype=jnp.bfloat16):
    """Pad the SVD basis to 128-aligned shapes, cast, and materialize V.T once.

    Returns (v, vt) with v: (Np, Kp), vt: (Kp, Np).  Cache these (like the
    module's registered buffer) and pass them to ideal_filter_apply.
    """
    N, K = ideal_pass.shape
    Np, Kp = _round_up(N, 128), _round_up(K, 128)
    v = ideal_pass.astype(compute_dtype)
    if (Np, Kp) != (N, K):                     # zero pad is exact for this op
        v = jnp.zeros((Np, Kp), compute_dtype).at[:N, :K].set(v)
    vt = v.T                                   # hoisted out of the forward pass
    return v, vt


# ----------------------------------------------------------------------------
# Forward pass
# ----------------------------------------------------------------------------
def _apply_btile(w, sig_c, v, vt, B, N, Np, Kp, tm, out_dtype, budget, limit_cap):
    compute_dtype = v.dtype
    cbytes = jnp.dtype(compute_dtype).itemsize
    obytes = jnp.dtype(out_dtype).itemsize

    def est(t):
        return (2 * t * Np * cbytes            # signal tile, double-buffered
                + 2 * t * Np * obytes          # output tile, double-buffered
                + Np * Kp * cbytes             # V   (Buffered(1), resident)
                + Kp * Np * cbytes             # V.T (Buffered(1), resident)
                + t * Kp * 4 + t * Np * 4)     # f32 proj / recon temporaries

    # >= 4 grid steps when the batch allows (feeds both v7x TCs, pipelines the
    # signal/output DMA), bounded by the requested tile and the VMEM budget.
    tm_eff = min(tm, _round_up(B, 8), max(8, _round_up(-(-B // 4), 8)))
    while tm_eff > 8 and est(tm_eff) > budget:
        tm_eff = max(8, (tm_eff // 2) // 8 * 8)

    nb = -(-B // tm_eff)                       # partial last tile: masked writeback
    vmem_limit = int(min(limit_cap, max(32 << 20, est(tm_eff) + (12 << 20))))

    out_p = pl.pallas_call(
        _ideal_filter_btile_kernel,
        out_shape=jax.ShapeDtypeStruct((B, Np), out_dtype),
        grid_spec=pltpu.PrefetchScalarGridSpec(
            num_scalar_prefetch=0,
            grid=(nb,),
            in_specs=[
                pl.BlockSpec(memory_space=pltpu.MemorySpace.SMEM),        # weight
                pl.BlockSpec((tm_eff, Np), lambda i: (i, 0)),             # signal
                pl.BlockSpec((Np, Kp), lambda i: (0, 0),
                             pipeline_mode=pl.Buffered(1)),               # V
                pl.BlockSpec((Kp, Np), lambda i: (0, 0),
                             pipeline_mode=pl.Buffered(1)),               # V.T
            ],
            out_specs=pl.BlockSpec((tm_eff, Np), lambda i: (i, 0)),
        ),
        compiler_params=pltpu.CompilerParams(
            dimension_semantics=("parallel",),
            vmem_limit_bytes=vmem_limit),
    )(w, sig_c, v, vt)
    return out_p if Np == N else out_p[:, :N]


def _apply_ntile(w, sig_c, v, vt, B, N, Np, Kp, tn, out_dtype, limit_cap):
    compute_dtype = v.dtype
    cbytes = jnp.dtype(compute_dtype).itemsize
    obytes = jnp.dtype(out_dtype).itemsize
    tm_eff = _round_up(B, 8)
    nn = Np // tn                              # tn divides Np by construction

    est = (tm_eff * Np * cbytes                # signal (Buffered(1), resident)
           + Np * Kp * cbytes                  # V      (Buffered(1), resident)
           + 2 * Kp * tn * cbytes              # V.T column tiles, double-buffered
           + 2 * tm_eff * tn * obytes          # output tiles, double-buffered
           + tm_eff * Kp * 4                   # proj scratch (f32)
           + tm_eff * tn * 4)                  # f32 recon temporary
    # TODO(synk): if the resident basis itself exceeds the VMEM budget
    # (N*K ~ 25-30k x 128 f32 on v7x), add an N-reduction grid axis for the
    # first matmul instead of relying on the resident layout.
    vmem_limit = int(min(limit_cap, max(32 << 20, est + (12 << 20))))

    out_p = pl.pallas_call(
        _ideal_filter_ntile_kernel,
        out_shape=jax.ShapeDtypeStruct((B, Np), out_dtype),
        grid_spec=pltpu.PrefetchScalarGridSpec(
            num_scalar_prefetch=0,
            grid=(nn,),
            in_specs=[
                pl.BlockSpec(memory_space=pltpu.MemorySpace.SMEM),        # weight
                pl.BlockSpec((tm_eff, Np), lambda j: (0, 0),
                             pipeline_mode=pl.Buffered(1)),               # signal
                pl.BlockSpec((Np, Kp), lambda j: (0, 0),
                             pipeline_mode=pl.Buffered(1)),               # V
                pl.BlockSpec((Kp, tn), lambda j: (0, j)),                 # V.T tile
            ],
            out_specs=pl.BlockSpec((tm_eff, tn), lambda j: (0, j)),
            scratch_shapes=[pltpu.VMEM((tm_eff, Kp), jnp.float32)],
        ),
        compiler_params=pltpu.CompilerParams(
            # proj scratch is filled at step 0 and reused -> sequential axis.
            dimension_semantics=("arbitrary",),
            vmem_limit_bytes=vmem_limit),
    )(w, sig_c, v, vt)
    return out_p if Np == N else out_p[:, :N]


@functools.partial(jax.jit, static_argnames=("tm", "out_dtype"))
def ideal_filter_apply(signal, v, vt, weight, *, tm=512, out_dtype=None):
    """forward(signal) = (signal @ V @ V.T) * weight, with (v, vt) from
    prepare_ideal_basis().  `weight` is a traced scalar (no recompiles)."""
    B, N = signal.shape
    Np, Kp = v.shape
    assert vt.shape == (Kp, Np)
    assert N <= Np and Np % 128 == 0 and Kp % 128 == 0, \
        "pass a basis produced by prepare_ideal_basis()"

    compute_dtype = v.dtype
    if out_dtype is None:
        out_dtype = compute_dtype              # full bf16 I/O by default

    # Single fused pad+cast pass over the signal; skipped when already aligned.
    if Np != N:
        sig_c = jnp.zeros((B, Np), compute_dtype).at[:, :N].set(
            signal.astype(compute_dtype))
    else:
        sig_c = signal.astype(compute_dtype)

    w = jnp.asarray(weight, jnp.float32).reshape((1,))
    budget, limit_cap = _vmem_policy()

    # Small-batch path: tile the item (N) axis instead of the batch axis.
    if B <= 64 and Np >= 256:
        if Np % 512 == 0 and Np >= 1024:
            tn = 512
        elif Np % 256 == 0 and Np >= 512:
            tn = 256
        else:
            tn = 128
        if Np // tn >= 2:
            return _apply_ntile(w, sig_c, v, vt, B, N, Np, Kp, tn,
                                out_dtype, limit_cap)

    return _apply_btile(w, sig_c, v, vt, B, N, Np, Kp, tm,
                        out_dtype, budget, limit_cap)


def ideal_filter_forward(signal, ideal_pass, weight, *,
                         compute_dtype=jnp.bfloat16, out_dtype=None, tm=512):
    """Convenience one-shot wrapper (prep is NOT cached — prefer
    prepare_ideal_basis + ideal_filter_apply for repeated calls)."""
    v, vt = prepare_ideal_basis(ideal_pass, compute_dtype)
    return ideal_filter_apply(signal, v, vt, weight, tm=tm, out_dtype=out_dtype)


# ----------------------------------------------------------------------------
# Self-test
# ----------------------------------------------------------------------------
if __name__ == "__main__":
    # TODO(synk): fit() (scipy sparse degree normalization + truncated SVD) is
    # host-side preprocessing, not part of the forward pass; a synthetic
    # orthonormal-ish basis stands in for ideal_pass.
    key = jax.random.PRNGKey(0)
    k1, k2, k3, k4 = jax.random.split(key, 4)

    N, K = 256, 32                 # n_items, threshold
    weight = 0.3
    ideal_pass = jax.random.normal(k2, (N, K), jnp.float32) / jnp.sqrt(N)

    def ref(sig, basis, w):
        return (sig @ basis @ basis.T) * w

    # --- default bf16 path with a cached (fit-time) basis ---------------------
    v_b, vt_b = prepare_ideal_basis(ideal_pass)                # bf16, done once

    sig_small = jax.random.normal(k1, (8, N), jnp.float32)     # small batch -> N-tiled path
    out1 = jax.block_until_ready(ideal_filter_apply(sig_small, v_b, vt_b, weight))
    assert out1.shape == (8, N)
    assert jnp.allclose(out1.astype(jnp.float32), ref(sig_small, ideal_pass, weight),
                        atol=1e-2, rtol=5e-2), "bf16 small-batch mismatch"

    sig_big = jax.random.normal(k3, (512, N), jnp.float32)     # batch-tiled path
    out2 = jax.block_until_ready(ideal_filter_apply(sig_big, v_b, vt_b, weight))
    assert out2.shape == (512, N)
    assert jnp.allclose(out2.astype(jnp.float32), ref(sig_big, ideal_pass, weight),
                        atol=1e-2, rtol=5e-2), "bf16 batch-tiled mismatch"

    # --- f32 opt-in path: tight check of the kernel logic ---------------------
    v_f, vt_f = prepare_ideal_basis(ideal_pass, compute_dtype=jnp.float32)
    sig_odd = jax.random.normal(k4, (100, N), jnp.float32)     # partial batch tile
    out3 = jax.block_until_ready(
        ideal_filter_apply(sig_odd, v_f, vt_f, weight, out_dtype=jnp.float32))
    assert jnp.allclose(out3, ref(sig_odd, ideal_pass, weight),
                        atol=5e-4, rtol=5e-4), "f32 batch-tiled mismatch"

    # Non-128-aligned item count + tiny batch (padding + masked rows, f32).
    N2, K2 = 1000, 32
    basis2 = jax.random.normal(k2, (N2, K2), jnp.float32) / jnp.sqrt(N2)
    sig5 = jax.random.normal(k1, (5, N2), jnp.float32)
    out4 = jax.block_until_ready(
        ideal_filter_forward(sig5, basis2, weight,
                             compute_dtype=jnp.float32, out_dtype=jnp.float32))
    assert out4.shape == (5, N2)
    assert jnp.allclose(out4, ref(sig5, basis2, weight),
                        atol=5e-4, rtol=5e-4), "f32 padded/N-tiled mismatch"

    print("KERNEL_OK")
</pallas_src>

<mosaic_0001>
module attributes {stable_mosaic.version = 11 : i64} {
  func.func @_ideal_filter_ntile_kernel(%arg0: i32, %arg1: memref<1xf32, #tpu.memory_space<smem>>, %arg2: memref<8x256xbf16, #tpu.memory_space<vmem>>, %arg3: memref<256x128xbf16, #tpu.memory_space<vmem>>, %arg4: memref<128x128xbf16, #tpu.memory_space<vmem>>, %arg5: memref<8x128xbf16, #tpu.memory_space<vmem>>, %arg6: memref<8x128xf32, #tpu.memory_space<vmem>>) attributes {dimension_semantics = [#tpu.dimension_semantics<arbitrary>], iteration_bounds = array<i64: 2>, scalar_prefetch = 0 : i64, scratch_operands = 1 : i64, tpu.core_type = #tpu.core_type<tc>, window_params = [{transform_indices = @transform_0, window_bounds = array<i64: 1>}, {pipeline_mode = #tpu.pipeline_mode<synchronous>, transform_indices = @transform_1, window_bounds = array<i64: 8, 256>}, {pipeline_mode = #tpu.pipeline_mode<synchronous>, transform_indices = @transform_2, window_bounds = array<i64: 256, 128>}, {transform_indices = @transform_3, window_bounds = array<i64: 128, 128>}, {transform_indices = @transform_4, window_bounds = array<i64: 8, 128>}]} {
    %c0_i32 = arith.constant 0 : i32
    %0 = arith.cmpi eq, %arg0, %c0_i32 : i32
    %1 = arith.extui %0 : i1 to i32
    %c0_i32_0 = arith.constant 0 : i32
    %2 = arith.cmpi ne, %1, %c0_i32_0 : i32
    scf.if %2 {
      %c0_6 = arith.constant 0 : index
      %c0_7 = arith.constant 0 : index
      %9 = vector.load %arg2[%c0_6, %c0_7] : memref<8x256xbf16, #tpu.memory_space<vmem>>, vector<8x256xbf16>
      %c0_8 = arith.constant 0 : index
      %c0_9 = arith.constant 0 : index
      %10 = vector.load %arg3[%c0_8, %c0_9] : memref<256x128xbf16, #tpu.memory_space<vmem>>, vector<256x128xbf16>
      %cst_10 = arith.constant dense<0.000000e+00> : vector<8x128xf32>
      %11 = tpu.matmul %9, %10, %cst_10 {dimension_numbers = #tpu.dot_dimension_numbers<[1], [0], [0], [1], [0, 0, 1, 1], [], []>} : vector<8x256xbf16>, vector<256x128xbf16>, vector<8x128xf32> -> vector<8x128xf32>
      %c0_11 = arith.constant 0 : index
      %12 = memref.load %arg1[%c0_11] : memref<1xf32, #tpu.memory_space<smem>>
      %13 = vector.broadcast %12 : f32 to vector<8x128xf32>
      %14 = arith.mulf %11, %13 : vector<8x128xf32>
      %c0_12 = arith.constant 0 : index
      %c0_13 = arith.constant 0 : index
      %15 = vector.load %arg6[%c0_12, %c0_13] : memref<8x128xf32, #tpu.memory_space<vmem>>, vector<8x128xf32>
      tpu.vector_store %arg6[%c0_12, %c0_13], %14 {strides = array<i32>} : memref<8x128xf32, #tpu.memory_space<vmem>>, vector<8x128xf32>,
    } else {
    }
    %c0 = arith.constant 0 : index
    %c0_1 = arith.constant 0 : index
    %3 = vector.load %arg6[%c0, %c0_1] : memref<8x128xf32, #tpu.memory_space<vmem>>, vector<8x128xf32>
    %4 = arith.truncf %3 : vector<8x128xf32> to vector<8x128xbf16>
    %c0_2 = arith.constant 0 : index
    %c0_3 = arith.constant 0 : index
    %5 = vector.load %arg4[%c0_2, %c0_3] : memref<128x128xbf16, #tpu.memory_space<vmem>>, vector<128x128xbf16>
    %cst = arith.constant dense<0.000000e+00> : vector<8x128xf32>
    %6 = tpu.matmul %4, %5, %cst {dimension_numbers = #tpu.dot_dimension_numbers<[1], [0], [0], [1], [0, 0, 1, 1], [], []>} : vector<8x128xbf16>, vector<128x128xbf16>, vector<8x128xf32> -> vector<8x128xf32>
    %7 = arith.truncf %6 : vector<8x128xf32> to vector<8x128xbf16>
    %c0_4 = arith.constant 0 : index
    %c0_5 = arith.constant 0 : index
    %8 = vector.load %arg5[%c0_4, %c0_5] : memref<8x128xbf16, #tpu.memory_space<vmem>>, vector<8x128xbf16>
    tpu.vector_store %arg5[%c0_4, %c0_5], %7 {strides = array<i32>} : memref<8x128xbf16, #tpu.memory_space<vmem>>, vector<8x128xbf16>,
    return
  }
  func.func @transform_0(%arg0: i32) -> i32 {
    %c0_i32 = arith.constant 0 : i32
    %c0_i32_0 = arith.constant 0 : i32
    return %c0_i32 : i32
  }
  func.func @transform_1(%arg0: i32) -> (i32, i32) {
    %c0_i32 = arith.constant 0 : i32
    %c0_i32_0 = arith.constant 0 : i32
    %c0_i32_1 = arith.constant 0 : i32
    return %c0_i32, %c0_i32_0 : i32, i32
  }
  func.func @transform_2(%arg0: i32) -> (i32, i32) {
    %c0_i32 = arith.constant 0 : i32
    %c0_i32_0 = arith.constant 0 : i32
    %c0_i32_1 = arith.constant 0 : i32
    return %c0_i32, %c0_i32_0 : i32, i32
  }
  func.func @transform_3(%arg0: i32) -> (i32, i32) {
    %c0_i32 = arith.constant 0 : i32
    %c0_i32_0 = arith.constant 0 : i32
    return %c0_i32, %arg0 : i32, i32
  }
  func.func @transform_4(%arg0: i32) -> (i32, i32) {
    %c0_i32 = arith.constant 0 : i32
    %c0_i32_0 = arith.constant 0 : i32
    return %c0_i32, %arg0 : i32, i32
  }
}

</mosaic_0001>

<llo_original>
// kernel: ideal_filter_apply.1
$region0: #{ideal_filter_apply.1}
  #allocation0 [shape = 'u32[]', space=smem, size = 0x4, offset = 0x4, fixed_abs, tag = 'smem constant byte address 0x4 - core index']
  #allocation1 [shape = 'u32[144,128]{1,0:T(1,128)}', space=vmem, size = 0x12000, scoped, tag = 'internal scratch']
  #allocation2 [shape = 'f32[8,128]{1,0:T(8,128)}', space=vmem, size = 0x1000, scoped, tag = 'scratch operand']
  #allocation3 [shape = 'f32[1]{0:T(128)S(6)}', space=smem, size = 0x200, scoped, tag = 'scoped memory for ideal_filter_apply.1']
  %s0 = inlined_call_operand.<no memory space> [shape: f32[1], index: 0, kind: input, shape index: {}]
  %s1 = inlined_call_operand.vmem [shape: bf16[8,256], index: 1, kind: input, shape index: {}]
  %s2 = inlined_call_operand.hbm [shape: bf16[256,128], index: 2, kind: input, shape index: {}]
  %s3 = inlined_call_operand.hbm [shape: bf16[128,256], index: 3, kind: input, shape index: {}]
  %s4 = inlined_call_operand.hbm [shape: bf16[8,256], index: 4, kind: output, shape index: {}]
  %s5 = sld [smem:[#allocation0]]
  $region61: #{ideal_filter_apply.1} parent=0
    _
  %s7 = ssub.s32 1, %s5
  %s8 = scalar_select 0, %s7, %s5
  %9 = sst [smem:[#allocation3]] %s0
  $region1: #{ideal_filter_apply.1} parent=0
    #allocation4 [shape = 'u8[65536]{0}', space=vmem, size = 0x10000, scoped, tag = 'input window, operand 2, single buffered']
    #allocation5 [shape = 's32[2]{0}', space=sflag, size = 0x8, scoped, tag = 'scoped memory for ideal_filter_apply.1']
    #allocation6 [shape = 's32[2]{0}', space=sflag, size = 0x8, scoped, tag = 'scoped memory for ideal_filter_apply.1']
    #allocation7 [shape = 'u8[65536]{0}', space=vmem, size = 0x10000, scoped, tag = 'input window, operand 3']
    #allocation8 [shape = 's32[2]{0}', space=sflag, size = 0x8, scoped, tag = 'scoped memory for ideal_filter_apply.1']
    #allocation9 [shape = 'u8[4096]{0}', space=vmem, size = 0x1000, scoped, tag = 'output window, operand 0']
    %10 = vsyncpa [#allocation5], 0
    %11 = vsyncpa [#allocation8], 0
    %s12 = scalar_lea.sflag [#allocation8], 1
    %13 = vsyncpa %s12, 0
    %14 = vsyncpa [#allocation6], 0
    %s15 = scalar_lea.sflag [#allocation6], 1
    %16 = vsyncpa %s15, 0
    loop: start=0, step=1, limit=4
    $region2: #{ideal_filter_apply.1} parent=1 // loop_pre_header
      _
    $region3: #{ideal_filter_apply.1} parent=1 // loop_header
      %s18 = sphi 0, %s22
      %p19 = scmp.ge.s32.totalorder %s18, 4
      %s26 = sphi 0, %s26
      %s28 = sphi 0, %s26
      %s29 = sphi 0, %s28
      %s43 = sphi 0, %s29
      %s47 = sphi 0, %s47
      %s49 = sphi 0, %s47
      %s50 = sphi 0, %s49
      %s64 = sphi 0, %s50
      %s68 = sphi 0, %s68
      %s70 = sphi 0, %s68
      %s71 = sphi 0, %s70
      %s85 = sphi 0, %s71
      %s91 = sphi 0, %s93
      %s94 = sphi 0, %s91
      %s95 = sphi 0, %s94
      %s111 = sphi 0, %s95
      %s117 = sphi 0, %s119
      %s120 = sphi 0, %s117
      %s121 = sphi 0, %s120
      %s137 = sphi 0, %s121
    $region4: #{ideal_filter_apply.1} parent=1 // loop_header_branch
      %21 = sbr.rel (%p19) target = $region8
    $region5: #{ideal_filter_apply.1} parent=1 // loop_body
      %s23 = ssub.s32 %s18, 1
      %s24 = ssub.s32 %s18, 2
      %s25 = sadd.s32 %s18, 1
      %s27 = sadd.s32 %s26, 1
      %p30 = scmp.eq.s32.totalorder %s18, 1
      %p31 = scmp.ne.s32.totalorder %s26, %s28
      %p32 = scmp.eq.s32.totalorder %s18, 0
      %p33 = por %p31, %p32
      %p34 = scmp.ne.s32.totalorder %s26, %s28
      %p35 = scmp.eq.s32.totalorder %s23, 1
      %p36 = por %p34, %p35
      %p37 = scmp.ne.s32.totalorder %s28, %s29
      %p38 = scmp.eq.s32.totalorder %s23, 0
      %p39 = por %p37, %p38
      %p40 = scmp.ne.s32.totalorder %s28, %s29
      %p41 = scmp.eq.s32.totalorder %s24, 1
      %p42 = por %p40, %p41
      %p44 = scmp.ne.s32.totalorder %s29, %s43
      %p45 = scmp.eq.s32.totalorder %s24, 0
      %p46 = por %p44, %p45
      %s48 = sadd.s32 %s47, 1
      %p51 = scmp.eq.s32.totalorder %s18, 1
      %p52 = scmp.ne.s32.totalorder %s47, %s49
      %p53 = scmp.eq.s32.totalorder %s18, 0
      %p54 = por %p52, %p53
      %p55 = scmp.ne.s32.totalorder %s47, %s49
      %p56 = scmp.eq.s32.totalorder %s23, 1
      %p57 = por %p55, %p56
      %p58 = scmp.ne.s32.totalorder %s49, %s50
      %p59 = scmp.eq.s32.totalorder %s23, 0
      %p60 = por %p58, %p59
      %p61 = scmp.ne.s32.totalorder %s49, %s50
      %p62 = scmp.eq.s32.totalorder %s24, 1
      %p63 = por %p61, %p62
      %p65 = scmp.ne.s32.totalorder %s50, %s64
      %p66 = scmp.eq.s32.totalorder %s24, 0
      %p67 = por %p65, %p66
      %s69 = sadd.s32 %s68, 1
      %p72 = scmp.eq.s32.totalorder %s18, 1
      %p73 = scmp.ne.s32.totalorder %s68, %s70
      %p74 = scmp.eq.s32.totalorder %s18, 0
      %p75 = por %p73, %p74
      %p76 = scmp.ne.s32.totalorder %s68, %s70
      %p77 = scmp.eq.s32.totalorder %s23, 1
      %p78 = por %p76, %p77
      %p79 = scmp.ne.s32.totalorder %s70, %s71
      %p80 = scmp.eq.s32.totalorder %s23, 0
      %p81 = por %p79, %p80
      %p82 = scmp.ne.s32.totalorder %s70, %s71
      %p83 = scmp.eq.s32.totalorder %s24, 1
      %p84 = por %p82, %p83
      %p86 = scmp.ne.s32.totalorder %s71, %s85
      %p87 = scmp.eq.s32.totalorder %s24, 0
      %p88 = por %p86, %p87
      %s89 = ssub.s32 %s18, %s25
      %p90 = scmp.eq.s32.totalorder %s89, 0
      %s92 = sadd.s32 %s91, 1
      %s93 = scalar_select %p90, %s91, %s92
      %p96 = pneg %p90
      %p97 = scmp.eq.s32.totalorder %s18, 1
      %p98 = por %p96, %p97
      %p99 = scmp.ne.s32.totalorder %s91, %s94
      %p100 = scmp.eq.s32.totalorder %s18, 0
      %p101 = por %p99, %p100
      %p102 = scmp.ne.s32.totalorder %s91, %s94
      %p103 = scmp.eq.s32.totalorder %s23, 1
      %p104 = por %p102, %p103
      %p105 = scmp.ne.s32.totalorder %s94, %s95
      %p106 = scmp.eq.s32.totalorder %s23, 0
      %p107 = por %p105, %p106
      %p108 = scmp.ne.s32.totalorder %s94, %s95
      %p109 = scmp.eq.s32.totalorder %s24, 1
      %p110 = por %p108, %p109
      %p112 = scmp.ne.s32.totalorder %s95, %s111
      %p113 = scmp.eq.s32.totalorder %s24, 0
      %p114 = por %p112, %p113
      %s115 = ssub.s32 %s18, %s25
      %p116 = scmp.eq.s32.totalorder %s115, 0
      %s118 = sadd.s32 %s117, 1
      %s119 = scalar_select %p116, %s117, %s118
      %p122 = pneg %p116
      %p123 = scmp.eq.s32.totalorder %s18, 1
      %p124 = por %p122, %p123
      %p125 = scmp.ne.s32.totalorder %s117, %s120
      %p126 = scmp.eq.s32.totalorder %s18, 0
      %p127 = por %p125, %p126
      %p128 = scmp.ne.s32.totalorder %s117, %s120
      %p129 = scmp.eq.s32.totalorder %s23, 1
      %p130 = por %p128, %p129
      %p131 = scmp.ne.s32.totalorder %s120, %s121
      %p132 = scmp.eq.s32.totalorder %s23, 0
      %p133 = por %p131, %p132
      %p134 = scmp.ne.s32.totalorder %s120, %s121
      %p135 = scmp.eq.s32.totalorder %s24, 1
      %p136 = por %p134, %p135
      %p138 = scmp.ne.s32.totalorder %s121, %s137
      %p139 = scmp.eq.s32.totalorder %s24, 0
      %p140 = por %p138, %p139
      %p141 = scmp.le.s32.totalorder 1, %s18
      %p142 = scmp.lt.s32.totalorder %s18, 3
      %p143 = pnand %p141, %p142
      %p144 = pneg %p143
      // Predicated region
      $region9: #{ideal_filter_apply.1} parent=5 // pred_check
        _
      $region10: #{ideal_filter_apply.1} parent=5 // pred_check_branch
        %146 = sbr.rel (%p143) target = $region12
      $region11: #{ideal_filter_apply.1} parent=5 // pred_region
        %s147 = ssub.s32 %s18, 1
        // Predicated region
        $region13: #{ideal_filter_apply.1} parent=11 // pred_check
          %p148 = pneg %p39
        $region14: #{ideal_filter_apply.1} parent=11 // pred_check_branch
          %150 = sbr.rel (%p148) target = $region16
        $region15: #{ideal_filter_apply.1} parent=11 // pred_region
          _
        $region16: #{ideal_filter_apply.1} parent=11 // pred_fallthru
          _
        // Predicated region
        $region17: #{ideal_filter_apply.1} parent=11 // pred_check
          %p151 = pneg %p60
        $region18: #{ideal_filter_apply.1} parent=11 // pred_check_branch
          %153 = sbr.rel (%p151) target = $region20
        $region19: #{ideal_filter_apply.1} parent=11 // pred_region
          _
        $region20: #{ideal_filter_apply.1} parent=11 // pred_fallthru
          _
        // Predicated region
        $region21: #{ideal_filter_apply.1} parent=11 // pred_check
          %p154 = pneg %p81
        $region22: #{ideal_filter_apply.1} parent=11 // pred_check_branch
          %156 = sbr.rel (%p154) target = $region24
        $region23: #{ideal_filter_apply.1} parent=11 // pred_region
          %s158 = ssub.s32 2048, 2048
          %159 = vsyncadd [#allocation5], %s158
          %s160 = sshll.u32 [#allocation4], 4
          %s161 = int_to_ptr.vmem [resolvable:$true] %s160
          %166 = dma.hbm_to_vmem [thread:$0]  %s2, 2048, %s161, [#allocation5], 64, 64, 4
        $region24: #{ideal_filter_apply.1} parent=11 // pred_fallthru
          _
      $region12: #{ideal_filter_apply.1} parent=5 // pred_fallthru
        _
      %p167 = scmp.lt.s32.totalorder %s18, 2
      // Predicated region
      $region25: #{ideal_filter_apply.1} parent=5 // pred_check
        %p168 = pneg %p167
      $region26: #{ideal_filter_apply.1} parent=5 // pred_check_branch
        %170 = sbr.rel (%p168) target = $region28
      $region27: #{ideal_filter_apply.1} parent=5 // pred_region
        // Predicated region
        $region29: #{ideal_filter_apply.1} parent=27 // pred_check
          %p171 = pneg %p101
        $region30: #{ideal_filter_apply.1} parent=27 // pred_check_branch
          %173 = sbr.rel (%p171) target = $region32
        $region31: #{ideal_filter_apply.1} parent=27 // pred_region
          %s174 = sand.u32 %s91, 1
          %s175 = scalar_lea.sflag [#allocation8], %s174
          %s176 = sand.u32 %s91, 1
          %s177 = smul.addr %s176, 64
          %s178 = scalar_lea.vmem [#allocation7], %s177
          %s180 = ssub.s32 1024, 1024
          %181 = vsyncadd %s175, %s180
          %s182 = smul.addr %s18, 64
          %s183 = scalar_lea.hbm %s3, %s182
          %s184 = sshll.u32 %s178, 4
          %s185 = int_to_ptr.vmem [resolvable:$true] %s184
          %190 = dma.hbm_to_vmem [thread:$0]  %s183, 1024, %s185, %s175, 128, 64, 4
        $region32: #{ideal_filter_apply.1} parent=27 // pred_fallthru
          _
      $region28: #{ideal_filter_apply.1} parent=5 // pred_fallthru
        _
      %p191 = scmp.le.s32.totalorder 1, %s18
      %p192 = scmp.lt.s32.totalorder %s18, 3
      %p193 = pnand %p191, %p192
      %p194 = pneg %p193
      // Predicated region
      $region33: #{ideal_filter_apply.1} parent=5 // pred_check
        _
      $region34: #{ideal_filter_apply.1} parent=5 // pred_check_branch
        %196 = sbr.rel (%p193) target = $region36
      $region35: #{ideal_filter_apply.1} parent=5 // pred_region
        %s197 = ssub.s32 %s18, 1
        // Predicated region
        $region37: #{ideal_filter_apply.1} parent=35 // pred_check
          %p198 = pneg %p81
        $region38: #{ideal_filter_apply.1} parent=35 // pred_check_branch
          %200 = sbr.rel (%p198) target = $region40
        $region39: #{ideal_filter_apply.1} parent=35 // pred_region
          %201 = dma.done [#allocation5], 2048
        $region40: #{ideal_filter_apply.1} parent=35 // pred_fallthru
          _
        %s202 = sand.u32 %s94, 1
        %s203 = scalar_lea.sflag [#allocation8], %s202
        %s204 = sand.u32 %s94, 1
        %s205 = smul.addr %s204, 64
        %s206 = scalar_lea.vmem [#allocation7], %s205
        // Predicated region
        $region41: #{ideal_filter_apply.1} parent=35 // pred_check
          %p207 = pneg %p107
        $region42: #{ideal_filter_apply.1} parent=35 // pred_check_branch
          %209 = sbr.rel (%p207) target = $region44
        $region43: #{ideal_filter_apply.1} parent=35 // pred_region
          %210 = dma.done %s203, 1024
        $region44: #{ideal_filter_apply.1} parent=35 // pred_fallthru
          _
        %p211 = pneg %p39
        %p212 = pneg %p36
        %p213 = pneg %p60
        %p214 = pneg %p57
        %p215 = pneg %p81
        %p216 = pneg %p78
        %s217 = sand.u32 %s94, 1
        %s218 = scalar_lea.sflag [#allocation8], %s217
        %s219 = sand.u32 %s94, 1
        %s220 = smul.addr %s219, 64
        %s221 = scalar_lea.vmem [#allocation7], %s220
        %p222 = pneg %p107
        %p223 = pneg %p104
        %p224 = pneg %p133
        %p225 = pneg %p130
        %s226 = sand.u32 %s120, 1
        %s227 = scalar_lea.sflag [#allocation6], %s226
        %s228 = sand.u32 %s120, 1
        %s229 = smul.addr %s228, 4
        %s230 = scalar_lea.vmem [#allocation9], %s229
        %p232 = scmp.eq.s32.totalorder %s23, 0
        // Predicated region
        $region45: #{ideal_filter_apply.1} parent=35 // pred_check
          %p233 = pneg %p232
        $region46: #{ideal_filter_apply.1} parent=35 // pred_check_branch
          %235 = sbr.rel (%p233) target = $region48
        $region47: #{ideal_filter_apply.1} parent=35 // pred_region
          %v236 = vld [vmem:[%s1] sm:$0xff]
          %v237 = vld [vmem:[#allocation4] sm:$0xf]
          %v238 = vld [vmem:[#allocation4 + $0x4] sm:$0xf]
          %v239 = vld [vmem:[#allocation4 + $0x8] sm:$0xf]
          %v240 = vld [vmem:[#allocation4 + $0xc] sm:$0xf]
          %v241 = vld [vmem:[#allocation4 + $0x10] sm:$0xf]
          %v242 = vld [vmem:[#allocation4 + $0x14] sm:$0xf]
          %v243 = vld [vmem:[#allocation4 + $0x18] sm:$0xf]
          %v244 = vld [vmem:[#allocation4 + $0x1c] sm:$0xf]
          %v245 = vld [vmem:[#allocation4 + $0x20] sm:$0xf]
          %v246 = vld [vmem:[#allocation4 + $0x24] sm:$0xf]
          %v247 = vld [vmem:[#allocation4 + $0x28] sm:$0xf]
          %v248 = vld [vmem:[#allocation4 + $0x2c] sm:$0xf]
          %v249 = vld [vmem:[#allocation4 + $0x30] sm:$0xf]
          %v250 = vld [vmem:[#allocation4 + $0x34] sm:$0xf]
          %v251 = vld [vmem:[#allocation4 + $0x38] sm:$0xf]
          %v252 = vld [vmem:[#allocation4 + $0x3c] sm:$0xf]
          %v253 = vld [vmem:[#allocation4 + $0x40] sm:$0xf]
          %v254 = vld [vmem:[#allocation4 + $0x44] sm:$0xf]
          %v255 = vld [vmem:[#allocation4 + $0x48] sm:$0xf]
          %v256 = vld [vmem:[#allocation4 + $0x4c] sm:$0xf]
          %v257 = vld [vmem:[#allocation4 + $0x50] sm:$0xf]
          %v258 = vld [vmem:[#allocation4 + $0x54] sm:$0xf]
          %v259 = vld [vmem:[#allocation4 + $0x58] sm:$0xf]
          %v260 = vld [vmem:[#allocation4 + $0x5c] sm:$0xf]
          %v261 = vld [vmem:[#allocation4 + $0x60] sm:$0xf]
          %v262 = vld [vmem:[#allocation4 + $0x64] sm:$0xf]
          %v263 = vld [vmem:[#allocation4 + $0x68] sm:$0xf]
          %v264 = vld [vmem:[#allocation4 + $0x6c] sm:$0xf]
          %v265 = vld [vmem:[#allocation4 + $0x70] sm:$0xf]
          %v266 = vld [vmem:[#allocation4 + $0x74] sm:$0xf]
          %v267 = vld [vmem:[#allocation4 + $0x78] sm:$0xf]
          %v268 = vld [vmem:[#allocation4 + $0x7c] sm:$0xf]
          %v270 = vunpack.c.l.b16 %v236
          %v271 = vunpack.c.h.b16 %v236
          %v272 = vpack.c.b16 %v270, %v270
          %v273 = vpack.c.b16 %v271, %v271
          %v308 = vunpack.c.l.b16 %v237
          %v309 = vunpack.c.l.b16 %v238
          %v310 = vunpack.c.l.b16 %v239
          %v311 = vunpack.c.l.b16 %v240
          %v312 = vunpack.c.l.b16 %v241
          %v313 = vunpack.c.l.b16 %v242
          %v314 = vunpack.c.l.b16 %v243
          %v315 = vunpack.c.l.b16 %v244
          %v316 = vunpack.c.l.b16 %v245
          %v317 = vunpack.c.l.b16 %v246
          %v318 = vunpack.c.l.b16 %v247
          %v319 = vunpack.c.l.b16 %v248
          %v320 = vunpack.c.l.b16 %v249
          %v321 = vunpack.c.l.b16 %v250
          %v322 = vunpack.c.l.b16 %v251
          %v323 = vunpack.c.l.b16 %v252
          %v324 = vunpack.c.l.b16 %v253
          %v325 = vunpack.c.l.b16 %v254
          %v326 = vunpack.c.l.b16 %v255
          %v327 = vunpack.c.l.b16 %v256
          %v328 = vunpack.c.l.b16 %v257
          %v329 = vunpack.c.l.b16 %v258
          %v330 = vunpack.c.l.b16 %v259
          %v331 = vunpack.c.l.b16 %v260
          %v332 = vunpack.c.l.b16 %v261
          %v333 = vunpack.c.l.b16 %v262
          %v334 = vunpack.c.l.b16 %v263
          %v335 = vunpack.c.l.b16 %v264
          %v336 = vunpack.c.l.b16 %v265
          %v337 = vunpack.c.l.b16 %v266
          %v338 = vunpack.c.l.b16 %v267
          %v339 = vunpack.c.l.b16 %v268
          %v340 = vpack.c.b16 %v309, %v308
          %v341 = vpack.c.b16 %v311, %v310
          %v342 = vpack.c.b16 %v313, %v312
          %v343 = vpack.c.b16 %v315, %v314
          %v344 = vpack.c.b16 %v317, %v316
          %v345 = vpack.c.b16 %v319, %v318
          %v346 = vpack.c.b16 %v321, %v320
          %v347 = vpack.c.b16 %v323, %v322
          %v348 = vpack.c.b16 %v325, %v324
          %v349 = vpack.c.b16 %v327, %v326
          %v350 = vpack.c.b16 %v329, %v328
          %v351 = vpack.c.b16 %v331, %v330
          %v352 = vpack.c.b16 %v333, %v332
          %v353 = vpack.c.b16 %v335, %v334
          %v354 = vpack.c.b16 %v337, %v336
          %v355 = vpack.c.b16 %v339, %v338
          %372 = vmatprep.subr.bf16.mxu0 0
          %373 = vmatpush1.bf16.msra.mxu0 %v347
          %374 = vmatprep.subr.bf16.mxu0 0
          %375 = vmatpush1.bf16.msra.mxu0 %v346
          %376 = vmatprep.subr.bf16.mxu0 0
          %377 = vmatpush1.bf16.msra.mxu0 %v345
          %378 = vmatprep.subr.bf16.mxu0 0
          %379 = vmatpush1.bf16.msra.mxu0 %v344
          %380 = vmatprep.subr.bf16.mxu0 0
          %381 = vmatpush1.bf16.msra.mxu0 %v343
          %382 = vmatprep.subr.bf16.mxu0 0
          %383 = vmatpush1.bf16.msra.mxu0 %v342
          %384 = vmatprep.subr.bf16.mxu0 0
          %385 = vmatpush1.bf16.msra.mxu0 %v341
          %386 = vmatprep.subr.bf16.mxu0 0
          %387 = vmatpush1.bf16.msra.mxu0 %v340
          %388 = vmatprep.subr.bf16.mxu0 0
          %389 = vmatpush2.bf16.msra.mxu0 %v355
          %390 = vmatprep.subr.bf16.mxu0 0
          %391 = vmatpush2.bf16.msra.mxu0 %v354
          %392 = vmatprep.subr.bf16.mxu0 0
          %393 = vmatpush2.bf16.msra.mxu0 %v353
          %394 = vmatprep.subr.bf16.mxu0 0
          %395 = vmatpush2.bf16.msra.mxu0 %v352
          %396 = vmatprep.subr.bf16.mxu0 0
          %397 = vmatpush2.bf16.msra.mxu0 %v351
          %398 = vmatprep.subr.bf16.mxu0 0
          %399 = vmatpush2.bf16.msra.mxu0 %v350
          %400 = vmatprep.subr.bf16.mxu0 0
          %401 = vmatpush2.bf16.msra.mxu0 %v349
          %402 = vmatprep.subr.bf16.mxu0 0
          %403 = vmatpush2.bf16.msra.mxu0 %v348
          %404 = vmatprep.mubr.bf16.mxu0 %v273
          %405 = vmatmul.mubr.bf16.gmra.mxu0 %v272
          %v406 = vpop.f32.mrf.mxu0
          %v407 = vadd.f32 0.0, %v406
          %v408 = vpop.f32.mrf.mxu0
          %v409 = vpop.f32.mrf.mxu0
          %v410 = vpop.f32.mrf.mxu0
          %411 = vdwg.mxu0
          %s412 = sld [smem:[#allocation3]]
          %v413 = vstv %s412
          %v414 = vmul.f32 %v407, %v413
          %415 = vst [vmem:[#allocation2] sm:$0xff] %v414
        $region48: #{ideal_filter_apply.1} parent=35 // pred_fallthru
          _
        %v416 = vld [vmem:[#allocation2] sm:$0xff]
        %v417 = vpack.c.bf16 %v416, %v416
        %v418 = vld [vmem:[%s206] sm:$0xf]
        %v419 = vld [vmem:[%s206 + $0x4] sm:$0xf]
        %v420 = vld [vmem:[%s206 + $0x8] sm:$0xf]
        %v421 = vld [vmem:[%s206 + $0xc] sm:$0xf]
        %v422 = vld [vmem:[%s206 + $0x10] sm:$0xf]
        %v423 = vld [vmem:[%s206 + $0x14] sm:$0xf]
        %v424 = vld [vmem:[%s206 + $0x18] sm:$0xf]
        %v425 = vld [vmem:[%s206 + $0x1c] sm:$0xf]
        %v426 = vld [vmem:[%s206 + $0x20] sm:$0xf]
        %v427 = vld [vmem:[%s206 + $0x24] sm:$0xf]
        %v428 = vld [vmem:[%s206 + $0x28] sm:$0xf]
        %v429 = vld [vmem:[%s206 + $0x2c] sm:$0xf]
        %v430 = vld [vmem:[%s206 + $0x30] sm:$0xf]
        %v431 = vld [vmem:[%s206 + $0x34] sm:$0xf]
        %v432 = vld [vmem:[%s206 + $0x38] sm:$0xf]
        %v433 = vld [vmem:[%s206 + $0x3c] sm:$0xf]
        %v450 = vunpack.c.l.b16 %v418
        %v451 = vunpack.c.l.b16 %v419
        %v452 = vunpack.c.l.b16 %v420
        %v453 = vunpack.c.l.b16 %v421
        %v454 = vunpack.c.l.b16 %v422
        %v455 = vunpack.c.l.b16 %v423
        %v456 = vunpack.c.l.b16 %v424
        %v457 = vunpack.c.l.b16 %v425
        %v458 = vunpack.c.l.b16 %v426
        %v459 = vunpack.c.l.b16 %v427
        %v460 = vunpack.c.l.b16 %v428
        %v461 = vunpack.c.l.b16 %v429
        %v462 = vunpack.c.l.b16 %v430
        %v463 = vunpack.c.l.b16 %v431
        %v464 = vunpack.c.l.b16 %v432
        %v465 = vunpack.c.l.b16 %v433
        %v466 = vpack.c.b16 %v451, %v450
        %v467 = vpack.c.b16 %v453, %v452
        %v468 = vpack.c.b16 %v455, %v454
        %v469 = vpack.c.b16 %v457, %v456
        %v470 = vpack.c.b16 %v459, %v458
        %v471 = vpack.c.b16 %v461, %v460
        %v472 = vpack.c.b16 %v463, %v462
        %v473 = vpack.c.b16 %v465, %v464
        %482 = vmatprep.subr.bf16.mxu0 0
        %483 = vmatpush1.bf16.msra.mxu0 %v473
        %484 = vmatprep.subr.bf16.mxu0 0
        %485 = vmatpush1.bf16.msra.mxu0 %v472
        %486 = vmatprep.subr.bf16.mxu0 0
        %487 = vmatpush1.bf16.msra.mxu0 %v471
        %488 = vmatprep.subr.bf16.mxu0 0
        %489 = vmatpush1.bf16.msra.mxu0 %v470
        %490 = vmatprep.subr.bf16.mxu0 0
        %491 = vmatpush1.bf16.msra.mxu0 %v469
        %492 = vmatprep.subr.bf16.mxu0 0
        %493 = vmatpush1.bf16.msra.mxu0 %v468
        %494 = vmatprep.subr.bf16.mxu0 0
        %495 = vmatpush1.bf16.msra.mxu0 %v467
        %496 = vmatprep.subr.bf16.mxu0 0
        %497 = vmatpush1.bf16.msra.mxu0 %v466
        %498 = vmatprep.subr.bf16.mxu0 0
        %499 = vmatpush2.bf16.msra.mxu0 0
        %500 = vmatprep.subr.bf16.mxu0 0
        %501 = vmatpush2.bf16.msra.mxu0 0
        %502 = vmatprep.subr.bf16.mxu0 0
        %503 = vmatpush2.bf16.msra.mxu0 0
        %504 = vmatprep.subr.bf16.mxu0 0
        %505 = vmatpush2.bf16.msra.mxu0 0
        %506 = vmatprep.subr.bf16.mxu0 0
        %507 = vmatpush2.bf16.msra.mxu0 0
        %508 = vmatprep.subr.bf16.mxu0 0
        %509 = vmatpush2.bf16.msra.mxu0 0
        %510 = vmatprep.subr.bf16.mxu0 0
        %511 = vmatpush2.bf16.msra.mxu0 0
        %512 = vmatprep.subr.bf16.mxu0 0
        %513 = vmatpush2.bf16.msra.mxu0 0
        %514 = vmatprep.mubr.bf16.mxu0 0
        %515 = vmatmul.mubr.bf16.gmra.mxu0 %v417
        %v516 = vpop.f32.mrf.mxu0
        %v517 = vadd.f32 0.0, %v516
        %v518 = vpop.f32.mrf.mxu0
        %v519 = vpop.f32.mrf.mxu0
        %v520 = vpop.f32.mrf.mxu0
        %521 = vdwg.mxu0
        %v522 = vpack.c.bf16 %v517, %v517
        %523 = vst [vmem:[%s230] sm:$0xf] %v522
        %s524 = sand.u32 %s120, 1
        %s525 = scalar_lea.sflag [#allocation6], %s524
        %s526 = sand.u32 %s120, 1
        %s527 = smul.addr %s526, 4
        %s528 = scalar_lea.vmem [#allocation9], %s527
        // Predicated region
        $region49: #{ideal_filter_apply.1} parent=35 // pred_check
          %p529 = pneg %p130
        $region50: #{ideal_filter_apply.1} parent=35 // pred_check_branch
          %531 = sbr.rel (%p529) target = $region52
        $region51: #{ideal_filter_apply.1} parent=35 // pred_region
          %s533 = ssub.s32 64, 64
          %534 = vsyncadd %s525, %s533
          %s535 = smul.addr %s23, 64
          %s536 = scalar_lea.hbm %s4, %s535
          %s538 = sshll.u32 %s528, 4
          %s539 = int_to_ptr.vmem [resolvable:$true] %s538
          %541 = dma.vmem_to_hbm [thread:$0]  %s539, 64, %s536, %s525
        $region52: #{ideal_filter_apply.1} parent=35 // pred_fallthru
          _
      $region36: #{ideal_filter_apply.1} parent=5 // pred_fallthru
        _
      %p542 = scmp.le.s32.totalorder 2, %s18
      // Predicated region
      $region53: #{ideal_filter_apply.1} parent=5 // pred_check
        %p543 = pneg %p542
      $region54: #{ideal_filter_apply.1} parent=5 // pred_check_branch
        %545 = sbr.rel (%p543) target = $region56
      $region55: #{ideal_filter_apply.1} parent=5 // pred_region
        %s546 = ssub.s32 %s18, 2
        // Predicated region
        $region57: #{ideal_filter_apply.1} parent=55 // pred_check
          %p547 = pneg %p136
        $region58: #{ideal_filter_apply.1} parent=55 // pred_check_branch
          %549 = sbr.rel (%p547) target = $region60
        $region59: #{ideal_filter_apply.1} parent=55 // pred_region
          %s550 = sand.u32 %s121, 1
          %s551 = scalar_lea.sflag [#allocation6], %s550
          %s552 = sand.u32 %s121, 1
          %s553 = smul.addr %s552, 4
          %s554 = scalar_lea.vmem [#allocation9], %s553
          %555 = dma.done %s551, 64
        $region60: #{ideal_filter_apply.1} parent=55 // pred_fallthru
          _
      $region56: #{ideal_filter_apply.1} parent=5 // pred_fallthru
        _
    $region6: #{ideal_filter_apply.1} parent=1 // loop_footer
      %s22 = sadd.s32 1, %s18
    $region7: #{ideal_filter_apply.1} parent=1 // loop_footer_branch
      %17 = sbr.rel target = $region3
    $region8: #{ideal_filter_apply.1} parent=1 // loop_exit
      _
    %556 = vsyncpa [#allocation5], 1
    %s557 = scalar_lea.sflag [#allocation5], 1
    %558 = vsyncpa %s557, 1
    %559 = vsyncpa [#allocation8], 1
    %s560 = scalar_lea.sflag [#allocation8], 1
    %561 = vsyncpa %s560, 1
    %562 = vsyncpa [#allocation6], 1
    %s563 = scalar_lea.sflag [#allocation6], 1
    %564 = vsyncpa %s563, 1

</llo_original>
